<compile_context>
chip_gen: v7x
topology: tpu7x:2x2x1
jax: 0.10.0
libtpu: 0.0.40
codegen_flags: <defaults>
</compile_context>

<pallas_src>
import numpy as np
import jax
import jax.numpy as jnp
from jax.experimental import pallas as pl
from jax.experimental.pallas import tpu as pltpu

IN1, OUT1, OUT2 = 10, 10, 5


def _round_up(n, m):
    return ((n + m - 1) // m) * m


def _vmem_capacity_bytes():
    """Per-core VMEM capacity (generation-aware); conservative fallback = v7x's 64 MiB."""
    try:
        return int(pltpu.get_tpu_info().vmem_capacity_bytes)
    except Exception:
        return 64 << 20


def _compiler_params(core_parallel, vmem_limit_bytes):
    # "parallel" is a cheap hint; on v7x pass core_parallel=True to actually shard the
    # batch grid across both TensorCores (each has its own HBM path).
    sem = (pltpu.CORE_PARALLEL,) if core_parallel else ("parallel",)
    return pltpu.CompilerParams(dimension_semantics=sem,
                                vmem_limit_bytes=vmem_limit_bytes)


def _cost_estimate(batch, itm_x, itm_o):
    flops = 2 * batch * (IN1 * OUT1 + OUT1 * OUT2)
    bytes_accessed = (batch * (IN1 * itm_x + OUT2 * itm_o)
                      + (IN1 + 1) * OUT1 * itm_x + (OUT1 + 1) * OUT2 * itm_x)
    return pl.CostEstimate(flops=flops, transcendentals=0, bytes_accessed=bytes_accessed)


# ----------------------------------------------------------------- standard (B, feat) layout

def _toy_mlp_kernel(x_ref, w1a_ref, w2a_ref, o_ref):
    # x_ref: (tb, IN1); w1a_ref: (IN1+1, OUT1) = [w1; b1]; w2a_ref: (OUT1+1, OUT2) = [w2; b2]
    x = x_ref[...]
    h = jnp.dot(x, w1a_ref[0:IN1, :], preferred_element_type=jnp.float32)
    h = jnp.maximum(h + w1a_ref[IN1:IN1 + 1, :].astype(jnp.float32), 0.0)
    h = h.astype(w2a_ref.dtype)
    o = jnp.dot(h, w2a_ref[0:OUT1, :], preferred_element_type=jnp.float32)
    o = o + w2a_ref[OUT1:OUT1 + 1, :].astype(jnp.float32)
    o_ref[...] = o.astype(o_ref.dtype)


def toy_model_forward(x, w1, b1, w2, b2, *, block_b=32768,
                      compute_dtype=jnp.float32, out_dtype=jnp.float32,
                      core_parallel=False):
    """y = relu(x @ w1 + b1) @ w2 + b2 fused in one Pallas kernel, batch-tiled.

    x: (B, 10) -> (B, 5).  No pad/slice copies: the last (ragged) batch block is handled
    by Pallas' masked boundary reads/writes.
    """
    B = x.shape[0]
    itm_x = np.dtype(compute_dtype).itemsize
    itm_o = np.dtype(out_dtype).itemsize

    # Pack biases into the weight buffers: 3 input DMAs instead of 5 (weights stay VMEM
    # resident via constant index_map).
    w1a = jnp.concatenate([w1, jnp.reshape(b1, (1, OUT1))], axis=0).astype(compute_dtype)
    w2a = jnp.concatenate([w2, jnp.reshape(b2, (1, OUT2))], axis=0).astype(compute_dtype)
    x = x.astype(compute_dtype)

    # VMEM budget: each (tb, feat) block is lane-padded to 128 and double-buffered by the
    # pipeline -> ~2*128*(itm_x+itm_o) bytes per batch row. Use half of physical VMEM.
    vmem_cap = _vmem_capacity_bytes()
    bytes_per_row = 2 * 128 * (itm_x + itm_o)
    budget_rows = max(8, int(vmem_cap * 0.5) // bytes_per_row)
    tb = min(block_b, budget_rows, _round_up(B, 8))
    tb = max(8, (tb // 8) * 8)                 # sublane rule, regardless of caller's block_b
    grid = (pl.cdiv(B, tb),)

    vmem_limit = int(min(vmem_cap * 0.9,
                         max(32 << 20, bytes_per_row * tb + (4 << 20))))

    return pl.pallas_call(
        _toy_mlp_kernel,
        out_shape=jax.ShapeDtypeStruct((B, OUT2), out_dtype),
        grid_spec=pl.GridSpec(
            grid=grid,
            in_specs=[
                pl.BlockSpec((tb, IN1), lambda i: (i, 0)),         # x streams per batch tile
                pl.BlockSpec((IN1 + 1, OUT1), lambda i: (0, 0)),   # weights stay resident
                pl.BlockSpec((OUT1 + 1, OUT2), lambda i: (0, 0)),
            ],
            out_specs=pl.BlockSpec((tb, OUT2), lambda i: (i, 0)),
        ),
        compiler_params=_compiler_params(core_parallel, vmem_limit),
        cost_estimate=_cost_estimate(B, itm_x, itm_o),
    )(x, w1a, w2a)


# ------------------------------------------------------------- lane-dense (transposed) layout

def _toy_mlp_kernel_t(xt_ref, w1t_ref, b1_ref, w2t_ref, b2_ref, ot_ref):
    # xt_ref: (IN1, tb); w1t: (OUT1, IN1); b1: (OUT1, 1); w2t: (OUT2, OUT1); b2: (OUT2, 1)
    xt = xt_ref[...]
    h = jnp.dot(w1t_ref[...], xt, preferred_element_type=jnp.float32)     # (OUT1, tb)
    h = jnp.maximum(h + b1_ref[...].astype(jnp.float32), 0.0)
    h = h.astype(w2t_ref.dtype)
    y = jnp.dot(w2t_ref[...], h, preferred_element_type=jnp.float32)      # (OUT2, tb)
    y = y + b2_ref[...].astype(jnp.float32)
    ot_ref[...] = y.astype(ot_ref.dtype)


def toy_model_forward_lane_dense(xT, w1, b1, w2, b2, *, block_b=1 << 17,
                                 compute_dtype=jnp.float32, out_dtype=jnp.float32,
                                 core_parallel=False):
    """Same math in transposed (lane-dense) layout: x^T (10, B) -> y^T (5, B).

    Batch sits on the 128-lane axis -> unmasked vector stores and much smaller VMEM blocks.
    Prefer this when the caller can produce/consume transposed activations.
    """
    assert xT.shape[0] == IN1
    B = xT.shape[1]
    itm_x = np.dtype(compute_dtype).itemsize
    itm_o = np.dtype(out_dtype).itemsize

    w1t = jnp.transpose(w1).astype(compute_dtype)            # (OUT1, IN1)
    w2t = jnp.transpose(w2).astype(compute_dtype)            # (OUT2, OUT1)
    b1c = jnp.reshape(b1, (OUT1, 1)).astype(compute_dtype)
    b2c = jnp.reshape(b2, (OUT2, 1)).astype(compute_dtype)
    xT = xT.astype(compute_dtype)

    # Per lane-column VMEM: sublane-padded feature dims, in/out double-buffered.
    vmem_cap = _vmem_capacity_bytes()
    sub_in = _round_up(IN1, 8 * (4 // itm_x))
    sub_out = _round_up(OUT2, 8 * (4 // itm_o))
    bytes_per_col = 2 * (sub_in * itm_x + sub_out * itm_o)
    budget_cols = max(128, int(vmem_cap * 0.5) // bytes_per_col)
    tb = min(block_b, budget_cols, _round_up(B, 128))
    tb = max(128, (tb // 128) * 128)          # 128-lane rule
    grid = (pl.cdiv(B, tb),)

    vmem_limit = int(min(vmem_cap * 0.9,
                         max(32 << 20, bytes_per_col * tb + (4 << 20))))

    return pl.pallas_call(
        _toy_mlp_kernel_t,
        out_shape=jax.ShapeDtypeStruct((OUT2, B), out_dtype),
        grid_spec=pl.GridSpec(
            grid=grid,
            in_specs=[
                pl.BlockSpec((IN1, tb), lambda i: (0, i)),        # x^T streams per lane tile
                pl.BlockSpec((OUT1, IN1), lambda i: (0, 0)),      # weights/biases resident
                pl.BlockSpec((OUT1, 1), lambda i: (0, 0)),
                pl.BlockSpec((OUT2, OUT1), lambda i: (0, 0)),
                pl.BlockSpec((OUT2, 1), lambda i: (0, 0)),
            ],
            out_specs=pl.BlockSpec((OUT2, tb), lambda i: (0, i)),
        ),
        compiler_params=_compiler_params(core_parallel, vmem_limit),
        cost_estimate=_cost_estimate(B, itm_x, itm_o),
    )(xT, w1t, b1c, w2t, b2c)


# --------------------------------------------------------------------------------- utilities

def init_params(key):
    # Deterministic init mirroring nn.Linear's default U(-1/sqrt(fan_in), 1/sqrt(fan_in)).
    k1, k2, k3, k4 = jax.random.split(key, 4)
    bound1 = 1.0 / float(np.sqrt(IN1))
    bound2 = 1.0 / float(np.sqrt(OUT1))
    # Stored as [in, out] (transposed relative to PyTorch's [out, in]).
    w1 = jax.random.uniform(k1, (IN1, OUT1), jnp.float32, -bound1, bound1)
    b1 = jax.random.uniform(k2, (1, OUT1), jnp.float32, -bound1, bound1)
    w2 = jax.random.uniform(k3, (OUT1, OUT2), jnp.float32, -bound2, bound2)
    b2 = jax.random.uniform(k4, (1, OUT2), jnp.float32, -bound2, bound2)
    return w1, b1, w2, b2


def reference_forward(x, w1, b1, w2, b2):
    h = jnp.maximum(x @ w1 + b1, 0.0)
    return h @ w2 + b2


if __name__ == "__main__":
    key = jax.random.PRNGKey(0)
    kx, kp = jax.random.split(key)

    # B deliberately NOT a multiple of the batch tile -> exercises the ragged last block
    # (masked boundary reads/writes) on both layouts; kept small so the script is cheap.
    B = 200
    x = jax.random.normal(kx, (B, IN1), jnp.float32)
    w1, b1, w2, b2 = init_params(kp)
    ref = reference_forward(x, w1, b1, w2, b2)

    # f32, standard (B, feat) layout; block_b=128 -> grid=(2,), ragged last block.
    out = jax.block_until_ready(toy_model_forward(x, w1, b1, w2, b2, block_b=128))
    assert out.shape == (B, OUT2)
    assert jnp.allclose(out, ref, atol=1e-5, rtol=1e-5)

    # bf16 operands + bf16 output (halves HBM traffic; f32 MXU accumulate).
    out_bf16 = jax.block_until_ready(
        toy_model_forward(x, w1, b1, w2, b2, block_b=128,
                          compute_dtype=jnp.bfloat16, out_dtype=jnp.bfloat16))
    assert jnp.allclose(out_bf16.astype(jnp.float32), ref, atol=5e-2, rtol=5e-2)

    # Lane-dense (transposed) layout: x^T in, y^T out.
    outT = jax.block_until_ready(
        toy_model_forward_lane_dense(x.T, w1, b1, w2, b2, block_b=128))
    assert outT.shape == (OUT2, B)
    assert jnp.allclose(outT.T, ref, atol=1e-5, rtol=1e-5)

    # TODO(synk): on v7x, call with core_parallel=True to shard the batch grid across both
    # TensorCores (pltpu.CORE_PARALLEL); left off by default since it is a no-op on 1-TC chips.

    print("KERNEL_OK")
</pallas_src>

<mosaic_0001>
module attributes {stable_mosaic.version = 11 : i64} {
  func.func @_toy_mlp_kernel(%arg0: i32, %arg1: memref<128x10xf32, #tpu.memory_space<vmem>>, %arg2: memref<11x10xf32, #tpu.memory_space<vmem>>, %arg3: memref<11x5xf32, #tpu.memory_space<vmem>>, %arg4: memref<128x5xf32, #tpu.memory_space<vmem>>) attributes {dimension_semantics = [#tpu.dimension_semantics<parallel>], iteration_bounds = array<i64: 2>, scalar_prefetch = 0 : i64, scratch_operands = 0 : i64, tpu.core_type = #tpu.core_type<tc>, window_params = [{transform_indices = @transform_0, window_bounds = array<i64: 128, 10>}, {pipeline_mode = #tpu.pipeline_mode<synchronous>, transform_indices = @transform_1, window_bounds = array<i64: 11, 10>}, {pipeline_mode = #tpu.pipeline_mode<synchronous>, transform_indices = @transform_2, window_bounds = array<i64: 11, 5>}, {transform_indices = @transform_3, window_bounds = array<i64: 128, 5>}]} {
    %c0 = arith.constant 0 : index
    %c0_0 = arith.constant 0 : index
    %0 = vector.load %arg1[%c0, %c0_0] : memref<128x10xf32, #tpu.memory_space<vmem>>, vector<128x10xf32>
    %c0_1 = arith.constant 0 : index
    %c0_2 = arith.constant 0 : index
    %1 = vector.load %arg2[%c0_1, %c0_2] : memref<11x10xf32, #tpu.memory_space<vmem>>, vector<10x10xf32>
    %cst = arith.constant dense<0.000000e+00> : vector<128x10xf32>
    %2 = tpu.matmul %0, %1, %cst {dimension_numbers = #tpu.dot_dimension_numbers<[1], [0], [0], [1], [0, 0, 1, 1], [], []>} : vector<128x10xf32>, vector<10x10xf32>, vector<128x10xf32> -> vector<128x10xf32>
    %c10 = arith.constant 10 : index
    %c0_3 = arith.constant 0 : index
    %3 = vector.load %arg2[%c10, %c0_3] : memref<11x10xf32, #tpu.memory_space<vmem>>, vector<1x10xf32>
    %4 = vector.broadcast %3 : vector<1x10xf32> to vector<128x10xf32>
    %5 = arith.addf %2, %4 : vector<128x10xf32>
    %cst_4 = arith.constant 0.000000e+00 : f32
    %6 = vector.broadcast %cst_4 : f32 to vector<128x10xf32>
    %7 = arith.maximumf %5, %6 : vector<128x10xf32>
    %c0_5 = arith.constant 0 : index
    %c0_6 = arith.constant 0 : index
    %8 = vector.load %arg3[%c0_5, %c0_6] : memref<11x5xf32, #tpu.memory_space<vmem>>, vector<10x5xf32>
    %cst_7 = arith.constant dense<0.000000e+00> : vector<128x5xf32>
    %9 = tpu.matmul %7, %8, %cst_7 {dimension_numbers = #tpu.dot_dimension_numbers<[1], [0], [0], [1], [0, 0, 1, 1], [], []>} : vector<128x10xf32>, vector<10x5xf32>, vector<128x5xf32> -> vector<128x5xf32>
    %c10_8 = arith.constant 10 : index
    %c0_9 = arith.constant 0 : index
    %10 = vector.load %arg3[%c10_8, %c0_9] : memref<11x5xf32, #tpu.memory_space<vmem>>, vector<1x5xf32>
    %11 = vector.broadcast %10 : vector<1x5xf32> to vector<128x5xf32>
    %12 = arith.addf %9, %11 : vector<128x5xf32>
    %c0_10 = arith.constant 0 : index
    %c0_11 = arith.constant 0 : index
    %13 = vector.load %arg4[%c0_10, %c0_11] : memref<128x5xf32, #tpu.memory_space<vmem>>, vector<128x5xf32>
    tpu.vector_store %arg4[%c0_10, %c0_11], %12 {strides = array<i32>} : memref<128x5xf32, #tpu.memory_space<vmem>>, vector<128x5xf32>,
    return
  }
  func.func @transform_0(%arg0: i32) -> (i32, i32) {
    %c0_i32 = arith.constant 0 : i32
    %c0_i32_0 = arith.constant 0 : i32
    return %arg0, %c0_i32 : i32, i32
  }
  func.func @transform_1(%arg0: i32) -> (i32, i32) {
    %c0_i32 = arith.constant 0 : i32
    %c0_i32_0 = arith.constant 0 : i32
    %c0_i32_1 = arith.constant 0 : i32
    return %c0_i32, %c0_i32_0 : i32, i32
  }
  func.func @transform_2(%arg0: i32) -> (i32, i32) {
    %c0_i32 = arith.constant 0 : i32
    %c0_i32_0 = arith.constant 0 : i32
    %c0_i32_1 = arith.constant 0 : i32
    return %c0_i32, %c0_i32_0 : i32, i32
  }
  func.func @transform_3(%arg0: i32) -> (i32, i32) {
    %c0_i32 = arith.constant 0 : i32
    %c0_i32_0 = arith.constant 0 : i32
    return %arg0, %c0_i32 : i32, i32
  }
}

</mosaic_0001>

<llo_original>
// kernel: tpu_custom_call.1
$region0: #{tpu_custom_call.1}
  #allocation0 [shape = 'u32[]', space=smem, size = 0x4, offset = 0x4, fixed_abs, tag = 'smem constant byte address 0x4 - core index']
  #allocation1 [shape = 'u32[144,128]{1,0:T(1,128)}', space=vmem, size = 0x12000, scoped, tag = 'internal scratch']
  %s0 = inlined_call_operand.vmem [shape: f32[200,10], index: 0, kind: input, shape index: {}]
  %s1 = inlined_call_operand.vmem [shape: f32[11,10], index: 1, kind: input, shape index: {}]
  %s2 = inlined_call_operand.vmem [shape: f32[11,5], index: 2, kind: input, shape index: {}]
  %s3 = inlined_call_operand.vmem [shape: f32[200,5], index: 3, kind: output, shape index: {}]
  %s4 = sld [smem:[#allocation0]]
  $region93: #{tpu_custom_call.1} parent=0
    _
  %s6 = ssub.s32 1, %s4
  %s7 = scalar_select 0, %s6, %s4
  $region1: #{tpu_custom_call.1} parent=0
    #allocation2 [shape = 'u8[131072]{0}', space=vmem, size = 0x20000, scoped, tag = 'output window, operand 0']
    loop: start=0, step=1, limit=4
    $region2: #{tpu_custom_call.1} parent=1 // loop_pre_header
      _
    $region3: #{tpu_custom_call.1} parent=1 // loop_header
      %s9 = sphi 0, %s13
      %p10 = scmp.ge.s32.totalorder %s9, 4
      %s19 = sphi 0, %s21
      %s22 = sphi 0, %s19
      %s23 = sphi 0, %s22
      %s39 = sphi 0, %s23
      %s43 = sphi 0, %s43
      %s45 = sphi 0, %s43
      %s46 = sphi 0, %s45
      %s60 = sphi 0, %s46
      %s64 = sphi 0, %s64
      %s66 = sphi 0, %s64
      %s67 = sphi 0, %s66
      %s81 = sphi 0, %s67
      %s87 = sphi 0, %s89
      %s90 = sphi 0, %s87
      %s91 = sphi 0, %s90
      %s107 = sphi 0, %s91
    $region4: #{tpu_custom_call.1} parent=1 // loop_header_branch
      %12 = sbr.rel (%p10) target = $region8
    $region5: #{tpu_custom_call.1} parent=1 // loop_body
      %s14 = ssub.s32 %s9, 1
      %s15 = ssub.s32 %s9, 2
      %s16 = sadd.s32 %s9, 1
      %s17 = ssub.s32 %s9, %s16
      %p18 = scmp.eq.s32.totalorder %s17, 0
      %s20 = sadd.s32 %s19, 1
      %s21 = scalar_select %p18, %s19, %s20
      %p24 = pneg %p18
      %p25 = scmp.eq.s32.totalorder %s9, 1
      %p26 = por %p24, %p25
      %p27 = scmp.ne.s32.totalorder %s19, %s22
      %p28 = scmp.eq.s32.totalorder %s9, 0
      %p29 = por %p27, %p28
      %p30 = scmp.ne.s32.totalorder %s19, %s22
      %p31 = scmp.eq.s32.totalorder %s14, 1
      %p32 = por %p30, %p31
      %p33 = scmp.ne.s32.totalorder %s22, %s23
      %p34 = scmp.eq.s32.totalorder %s14, 0
      %p35 = por %p33, %p34
      %p36 = scmp.ne.s32.totalorder %s22, %s23
      %p37 = scmp.eq.s32.totalorder %s15, 1
      %p38 = por %p36, %p37
      %p40 = scmp.ne.s32.totalorder %s23, %s39
      %p41 = scmp.eq.s32.totalorder %s15, 0
      %p42 = por %p40, %p41
      %s44 = sadd.s32 %s43, 1
      %p47 = scmp.eq.s32.totalorder %s9, 1
      %p48 = scmp.ne.s32.totalorder %s43, %s45
      %p49 = scmp.eq.s32.totalorder %s9, 0
      %p50 = por %p48, %p49
      %p51 = scmp.ne.s32.totalorder %s43, %s45
      %p52 = scmp.eq.s32.totalorder %s14, 1
      %p53 = por %p51, %p52
      %p54 = scmp.ne.s32.totalorder %s45, %s46
      %p55 = scmp.eq.s32.totalorder %s14, 0
      %p56 = por %p54, %p55
      %p57 = scmp.ne.s32.totalorder %s45, %s46
      %p58 = scmp.eq.s32.totalorder %s15, 1
      %p59 = por %p57, %p58
      %p61 = scmp.ne.s32.totalorder %s46, %s60
      %p62 = scmp.eq.s32.totalorder %s15, 0
      %p63 = por %p61, %p62
      %s65 = sadd.s32 %s64, 1
      %p68 = scmp.eq.s32.totalorder %s9, 1
      %p69 = scmp.ne.s32.totalorder %s64, %s66
      %p70 = scmp.eq.s32.totalorder %s9, 0
      %p71 = por %p69, %p70
      %p72 = scmp.ne.s32.totalorder %s64, %s66
      %p73 = scmp.eq.s32.totalorder %s14, 1
      %p74 = por %p72, %p73
      %p75 = scmp.ne.s32.totalorder %s66, %s67
      %p76 = scmp.eq.s32.totalorder %s14, 0
      %p77 = por %p75, %p76
      %p78 = scmp.ne.s32.totalorder %s66, %s67
      %p79 = scmp.eq.s32.totalorder %s15, 1
      %p80 = por %p78, %p79
      %p82 = scmp.ne.s32.totalorder %s67, %s81
      %p83 = scmp.eq.s32.totalorder %s15, 0
      %p84 = por %p82, %p83
      %s85 = ssub.s32 %s9, %s16
      %p86 = scmp.eq.s32.totalorder %s85, 0
      %s88 = sadd.s32 %s87, 1
      %s89 = scalar_select %p86, %s87, %s88
      %p92 = pneg %p86
      %p93 = scmp.eq.s32.totalorder %s9, 1
      %p94 = por %p92, %p93
      %p95 = scmp.ne.s32.totalorder %s87, %s90
      %p96 = scmp.eq.s32.totalorder %s9, 0
      %p97 = por %p95, %p96
      %p98 = scmp.ne.s32.totalorder %s87, %s90
      %p99 = scmp.eq.s32.totalorder %s14, 1
      %p100 = por %p98, %p99
      %p101 = scmp.ne.s32.totalorder %s90, %s91
      %p102 = scmp.eq.s32.totalorder %s14, 0
      %p103 = por %p101, %p102
      %p104 = scmp.ne.s32.totalorder %s90, %s91
      %p105 = scmp.eq.s32.totalorder %s15, 1
      %p106 = por %p104, %p105
      %p108 = scmp.ne.s32.totalorder %s91, %s107
      %p109 = scmp.eq.s32.totalorder %s15, 0
      %p110 = por %p108, %p109
      %p111 = scmp.le.s32.totalorder 1, %s9
      %p112 = scmp.lt.s32.totalorder %s9, 3
      %p113 = pnand %p111, %p112
      %p114 = pneg %p113
      // Predicated region
      $region9: #{tpu_custom_call.1} parent=5 // pred_check
        _
      $region10: #{tpu_custom_call.1} parent=5 // pred_check_branch
        %116 = sbr.rel (%p113) target = $region12
      $region11: #{tpu_custom_call.1} parent=5 // pred_region
        %s117 = ssub.s32 %s9, 1
        // Predicated region
        $region13: #{tpu_custom_call.1} parent=11 // pred_check
          %p118 = pneg %p56
        $region14: #{tpu_custom_call.1} parent=11 // pred_check_branch
          %120 = sbr.rel (%p118) target = $region16
        $region15: #{tpu_custom_call.1} parent=11 // pred_region
          _
        $region16: #{tpu_custom_call.1} parent=11 // pred_fallthru
          _
        // Predicated region
        $region17: #{tpu_custom_call.1} parent=11 // pred_check
          %p121 = pneg %p77
        $region18: #{tpu_custom_call.1} parent=11 // pred_check_branch
          %123 = sbr.rel (%p121) target = $region20
        $region19: #{tpu_custom_call.1} parent=11 // pred_region
          _
        $region20: #{tpu_custom_call.1} parent=11 // pred_fallthru
          _
      $region12: #{tpu_custom_call.1} parent=5 // pred_fallthru
        _
      %p124 = scmp.lt.s32.totalorder %s9, 2
      // Predicated region
      $region21: #{tpu_custom_call.1} parent=5 // pred_check
        %p125 = pneg %p124
      $region22: #{tpu_custom_call.1} parent=5 // pred_check_branch
        %127 = sbr.rel (%p125) target = $region24
      $region23: #{tpu_custom_call.1} parent=5 // pred_region
        // Predicated region
        $region25: #{tpu_custom_call.1} parent=23 // pred_check
          %p128 = pneg %p29
        $region26: #{tpu_custom_call.1} parent=23 // pred_check_branch
          %130 = sbr.rel (%p128) target = $region28
        $region27: #{tpu_custom_call.1} parent=23 // pred_region
          %s131 = smul.u32 16, %s9
          %s132 = ssub.s32 25, %s131
          %p133 = scmp.lt.s32.totalorder %s132, 16
          %s134 = scalar_select %p133, %s132, 16
          %s135 = smul.u32 128, %s134
          %p136 = scmp.lt.s32.totalorder %s131, 24
          %s137 = scalar_select %p136, %s131, 24
          %s138 = smul.addr %s137, 8
          %s139 = scalar_lea.vmem %s0, %s138
          %s140 = smul.u32 16, %s9
          %s141 = ssub.s32 25, %s140
          %p142 = scmp.lt.s32.totalorder %s141, 16
          %s143 = scalar_select %p142, %s141, 16
          %s144 = smul.u32 128, %s143
        $region28: #{tpu_custom_call.1} parent=23 // pred_fallthru
          _
      $region24: #{tpu_custom_call.1} parent=5 // pred_fallthru
        _
      %p145 = scmp.le.s32.totalorder 1, %s9
      %p146 = scmp.lt.s32.totalorder %s9, 3
      %p147 = pnand %p145, %p146
      %p148 = pneg %p147
      // Predicated region
      $region29: #{tpu_custom_call.1} parent=5 // pred_check
        _
      $region30: #{tpu_custom_call.1} parent=5 // pred_check_branch
        %150 = sbr.rel (%p147) target = $region32
      $region31: #{tpu_custom_call.1} parent=5 // pred_region
        %s151 = ssub.s32 %s9, 1
        %s152 = smul.u32 16, %s14
        %s153 = ssub.s32 25, %s152
        %p154 = scmp.lt.s32.totalorder %s153, 16
        %s155 = scalar_select %p154, %s153, 16
        %s156 = smul.u32 128, %s155
        %p157 = scmp.lt.s32.totalorder %s152, 24
        %s158 = scalar_select %p157, %s152, 24
        %s159 = smul.addr %s158, 8
        %s160 = scalar_lea.vmem %s0, %s159
        %p161 = pneg %p35
        %p162 = pneg %p32
        %p163 = pneg %p56
        %p164 = pneg %p53
        %p165 = pneg %p77
        %p166 = pneg %p74
        %p167 = pneg %p103
        %p168 = pneg %p100
        %s169 = sand.u32 %s90, 1
        %s170 = sand.u32 %s90, 1
        %s171 = smul.addr %s170, 128
        %s172 = scalar_lea.vmem [#allocation2], %s171
        %s173 = smul.u32 16, %s14
        %s174 = ssub.s32 25, %s173
        %p175 = scmp.lt.s32.totalorder %s174, 16
        %s176 = scalar_select %p175, %s174, 16
        %s177 = smul.u32 128, %s176
        %p178 = scmp.lt.s32.totalorder %s173, 24
        %s179 = scalar_select %p178, %s173, 24
        %s180 = smul.addr %s179, 8
        %s181 = scalar_lea.vmem %s0, %s180
        %s182 = smul.u32 16, %s14
        %s183 = ssub.s32 25, %s182
        %p184 = scmp.lt.s32.totalorder %s183, 16
        %s185 = scalar_select %p184, %s183, 16
        %s186 = smul.u32 128, %s185
        %s187 = smul.u32 16, %s14
        %s188 = ssub.s32 25, %s187
        %p189 = scmp.lt.s32.totalorder %s188, 16
        %s190 = scalar_select %p189, %s188, 16
        %s191 = smul.u32 128, %s190
        %v192 = vld [vmem:[%s181] sm:$0xff]
        %v193 = vld [vmem:[%s181 + $0x8] sm:$0xff]
        %v194 = vld [vmem:[%s181 + $0x10] sm:$0xff]
        %v195 = vld [vmem:[%s181 + $0x18] sm:$0xff]
        %v196 = vld [vmem:[%s181 + $0x20] sm:$0xff]
        %v197 = vld [vmem:[%s181 + $0x28] sm:$0xff]
        %v198 = vld [vmem:[%s181 + $0x30] sm:$0xff]
        %v199 = vld [vmem:[%s181 + $0x38] sm:$0xff]
        %v200 = vld [vmem:[%s181 + $0x40] sm:$0xff]
        %v201 = vld [vmem:[%s181 + $0x48] sm:$0xff]
        %v202 = vld [vmem:[%s181 + $0x50] sm:$0xff]
        %v203 = vld [vmem:[%s181 + $0x58] sm:$0xff]
        %v204 = vld [vmem:[%s181 + $0x60] sm:$0xff]
        %v205 = vld [vmem:[%s181 + $0x68] sm:$0xff]
        %v206 = vld [vmem:[%s181 + $0x70] sm:$0xff]
        %v207 = vld [vmem:[%s181 + $0x78] sm:$0xff]
        %v208 = vld [vmem:[%s1] sm:$0xff]
        %v209 = vld [vmem:[%s1 + $0x8] sm:$0x3]
        %v210 = vld [vmem:[%s1 + $0xa] sm:$0x1]
        %v211 = vlaneseq
        %v212 = vshrl.u32 %v211, 7
        %v213 = vsub.s32 0, %v212
        %v214 = vrot.slane %v210, %v213
        %vm215 = vcmask 80896
        %v217 = vsel %vm215, %v192, 0
        %v220 = vsel %vm215, %v193, 0
        %v223 = vsel %vm215, %v194, 0
        %v226 = vsel %vm215, %v195, 0
        %v229 = vsel %vm215, %v196, 0
        %v232 = vsel %vm215, %v197, 0
        %v235 = vsel %vm215, %v198, 0
        %v238 = vsel %vm215, %v199, 0
        %v241 = vsel %vm215, %v200, 0
        %v244 = vsel %vm215, %v201, 0
        %v247 = vsel %vm215, %v202, 0
        %v250 = vsel %vm215, %v203, 0
        %v253 = vsel %vm215, %v204, 0
        %v256 = vsel %vm215, %v205, 0
        %v259 = vsel %vm215, %v206, 0
        %v262 = vsel %vm215, %v207, 0
        %vm264 = vcmask 1041408
        %v266 = vsel %vm264, %v209, 0
        %268 = vmatprep.subr.mxu0 0.0
        %269 = vmatpush1.msra.mxu0 %v208
        %270 = vmatprep.subr.mxu0 0.0
        %271 = vmatpush1.msra.mxu0 %v266
        %272 = vmatprep.subr.mxu0 0.0
        %273 = vmatpush1.msra.mxu0 0.0
        %274 = vmatprep.subr.mxu0 0.0
        %275 = vmatpush1.msra.mxu0 0.0
        %276 = vmatprep.subr.mxu0 0.0
        %277 = vmatpush1.msra.mxu0 0.0
        %278 = vmatprep.subr.mxu0 0.0
        %279 = vmatpush1.msra.mxu0 0.0
        %280 = vmatprep.subr.mxu0 0.0
        %281 = vmatpush1.msra.mxu0 0.0
        %282 = vmatprep.subr.mxu0 0.0
        %283 = vmatpush1.msra.mxu0 0.0
        %284 = vmatprep.subr.mxu0 0.0
        %285 = vmatpush1.msra.mxu0 0.0
        %286 = vmatprep.subr.mxu0 0.0
        %287 = vmatpush1.msra.mxu0 0.0
        %288 = vmatprep.subr.mxu0 0.0
        %289 = vmatpush1.msra.mxu0 0.0
        %290 = vmatprep.subr.mxu0 0.0
        %291 = vmatpush1.msra.mxu0 0.0
        %292 = vmatprep.subr.mxu0 0.0
        %293 = vmatpush1.msra.mxu0 0.0
        %294 = vmatprep.subr.mxu0 0.0
        %295 = vmatpush1.msra.mxu0 0.0
        %296 = vmatprep.subr.mxu0 0.0
        %297 = vmatpush1.msra.mxu0 0.0
        %298 = vmatprep.subr.mxu0 0.0
        %299 = vmatpush1.msra.mxu0 0.0
        %300 = vmatprep.subr.mxu0 0.0
        %301 = vmatpush1.msra.mxu0 0.0
        %302 = vmatprep.subr.mxu0 0.0
        %303 = vmatpush1.msra.mxu0 0.0
        %304 = vmatprep.subr.mxu0 0.0
        %305 = vmatpush1.msra.mxu0 0.0
        %306 = vmatprep.subr.mxu0 0.0
        %307 = vmatpush1.msra.mxu0 0.0
        %308 = vmatprep.subr.mxu0 0.0
        %309 = vmatpush1.msra.mxu0 0.0
        %310 = vmatprep.subr.mxu0 0.0
        %311 = vmatpush1.msra.mxu0 0.0
        %312 = vmatprep.subr.mxu0 0.0
        %313 = vmatpush1.msra.mxu0 0.0
        %314 = vmatprep.subr.mxu0 0.0
        %315 = vmatpush1.msra.mxu0 0.0
        %316 = vmatprep.subr.mxu0 0.0
        %317 = vmatpush1.msra.mxu0 0.0
        %318 = vmatprep.subr.mxu0 0.0
        %319 = vmatpush1.msra.mxu0 0.0
        %320 = vmatprep.subr.mxu0 0.0
        %321 = vmatpush1.msra.mxu0 0.0
        %322 = vmatprep.subr.mxu0 0.0
        %323 = vmatpush1.msra.mxu0 0.0
        %324 = vmatprep.subr.mxu0 0.0
        %325 = vmatpush1.msra.mxu0 0.0
        %326 = vmatprep.subr.mxu0 0.0
        %327 = vmatpush1.msra.mxu0 0.0
        %328 = vmatprep.subr.mxu0 0.0
        %329 = vmatpush1.msra.mxu0 0.0
        %330 = vmatprep.subr.mxu0 0.0
        %331 = vmatpush1.msra.mxu0 0.0
        %332 = vmatprep.mubr.f32.mxu0 0.0
        %333 = vmatmul.mubr.f32.gmra.mrb[0].mxu0 %v217
        %v334 = vpop.f32.mrb[0].mxu0
        %v335 = vadd.f32 %v214, %v334
        %v336 = vpop.f32.mrb[0].mxu0
        %337 = vmatprep.mubr.f32.mxu0 0.0
        %338 = vmatmul.mubr.f32.gmra.mrb[0].mxu0 %v220
        %v339 = vpop.f32.mrb[0].mxu0
        %v340 = vadd.f32 %v214, %v339
        %v341 = vpop.f32.mrb[0].mxu0
        %342 = vmatprep.mubr.f32.mxu0 0.0
        %343 = vmatmul.mubr.f32.gmra.mrb[0].mxu0 %v223
        %v344 = vpop.f32.mrb[0].mxu0
        %v345 = vadd.f32 %v214, %v344
        %v346 = vpop.f32.mrb[0].mxu0
        %347 = vmatprep.mubr.f32.mxu0 0.0
        %348 = vmatmul.mubr.f32.gmra.mrb[0].mxu0 %v226
        %v349 = vpop.f32.mrb[0].mxu0
        %v350 = vadd.f32 %v214, %v349
        %v351 = vpop.f32.mrb[0].mxu0
        %352 = vmatprep.mubr.f32.mxu0 0.0
        %353 = vmatmul.mubr.f32.gmra.mrb[0].mxu0 %v229
        %v354 = vpop.f32.mrb[0].mxu0
        %v355 = vadd.f32 %v214, %v354
        %v356 = vpop.f32.mrb[0].mxu0
        %357 = vmatprep.mubr.f32.mxu0 0.0
        %358 = vmatmul.mubr.f32.gmra.mrb[0].mxu0 %v232
        %v359 = vpop.f32.mrb[0].mxu0
        %v360 = vadd.f32 %v214, %v359
        %v361 = vpop.f32.mrb[0].mxu0
        %362 = vmatprep.mubr.f32.mxu0 0.0
        %363 = vmatmul.mubr.f32.gmra.mrb[0].mxu0 %v235
        %v364 = vpop.f32.mrb[0].mxu0
        %v365 = vadd.f32 %v214, %v364
        %v366 = vpop.f32.mrb[0].mxu0
        %367 = vmatprep.mubr.f32.mxu0 0.0
        %368 = vmatmul.mubr.f32.gmra.mrb[0].mxu0 %v238
        %v369 = vpop.f32.mrb[0].mxu0
        %v370 = vadd.f32 %v214, %v369
        %v371 = vpop.f32.mrb[0].mxu0
        %372 = vmatprep.mubr.f32.mxu0 0.0
        %373 = vmatmul.mubr.f32.gmra.mrb[0].mxu0 %v241
        %v374 = vpop.f32.mrb[0].mxu0
        %v375 = vadd.f32 %v214, %v374
        %v376 = vpop.f32.mrb[0].mxu0
        %377 = vmatprep.mubr.f32.mxu0 0.0
        %378 = vmatmul.mubr.f32.gmra.mrb[0].mxu0 %v244
        %v379 = vpop.f32.mrb[0].mxu0
        %v380 = vadd.f32 %v214, %v379
        %v381 = vpop.f32.mrb[0].mxu0
        %382 = vmatprep.mubr.f32.mxu0 0.0
        %383 = vmatmul.mubr.f32.gmra.mrb[0].mxu0 %v247
        %v384 = vpop.f32.mrb[0].mxu0
        %v385 = vadd.f32 %v214, %v384
        %v386 = vpop.f32.mrb[0].mxu0
        %387 = vmatprep.mubr.f32.mxu0 0.0
        %388 = vmatmul.mubr.f32.gmra.mrb[0].mxu0 %v250
        %v389 = vpop.f32.mrb[0].mxu0
        %v390 = vadd.f32 %v214, %v389
        %v391 = vpop.f32.mrb[0].mxu0
        %392 = vmatprep.mubr.f32.mxu0 0.0
        %393 = vmatmul.mubr.f32.gmra.mrb[0].mxu0 %v253
        %v394 = vpop.f32.mrb[0].mxu0
        %v395 = vadd.f32 %v214, %v394
        %v396 = vpop.f32.mrb[0].mxu0
        %397 = vmatprep.mubr.f32.mxu0 0.0
        %398 = vmatmul.mubr.f32.gmra.mrb[0].mxu0 %v256
        %v399 = vpop.f32.mrb[0].mxu0
        %v400 = vadd.f32 %v214, %v399
        %v401 = vpop.f32.mrb[0].mxu0
        %402 = vmatprep.mubr.f32.mxu0 0.0
        %403 = vmatmul.mubr.f32.gmra.mrb[0].mxu0 %v259
        %v404 = vpop.f32.mrb[0].mxu0
        %v405 = vadd.f32 %v214, %v404
        %v406 = vpop.f32.mrb[0].mxu0
        %407 = vmatprep.mubr.f32.mxu0 0.0
        %408 = vmatmul.mubr.f32.gmra.mrb[0].mxu0 %v262
        %v409 = vpop.f32.mrb[0].mxu0
        %v410 = vadd.f32 %v214, %v409
        %v411 = vpop.f32.mrb[0].mxu0
        %412 = vdwg.mxu0
        %v413 = vmax.f32 %v335, 0.0
        %v414 = vmax.f32 %v340, 0.0
        %v415 = vmax.f32 %v345, 0.0
        %v416 = vmax.f32 %v350, 0.0
        %v417 = vmax.f32 %v355, 0.0
        %v418 = vmax.f32 %v360, 0.0
        %v419 = vmax.f32 %v365, 0.0
        %v420 = vmax.f32 %v370, 0.0
        %v421 = vmax.f32 %v375, 0.0
        %v422 = vmax.f32 %v380, 0.0
        %v423 = vmax.f32 %v385, 0.0
        %v424 = vmax.f32 %v390, 0.0
        %v425 = vmax.f32 %v395, 0.0
        %v426 = vmax.f32 %v400, 0.0
        %v427 = vmax.f32 %v405, 0.0
        %v428 = vmax.f32 %v410, 0.0
        %v429 = vld [vmem:[%s2] sm:$0xff]
        %v430 = vld [vmem:[%s2 + $0x8] sm:$0x3]
        %v431 = vld [vmem:[%s2 + $0xa] sm:$0x1]
        %v432 = vlaneseq
        %v433 = vshrl.u32 %v432, 7
        %v434 = vsub.s32 0, %v433
        %v435 = vrot.slane %v431, %v434
        %v437 = vsel %vm215, %v413, 0
        %v440 = vsel %vm215, %v414, 0
        %v443 = vsel %vm215, %v415, 0
        %v446 = vsel %vm215, %v416, 0
        %v449 = vsel %vm215, %v417, 0
        %v452 = vsel %vm215, %v418, 0
        %v455 = vsel %vm215, %v419, 0
        %v458 = vsel %vm215, %v420, 0
        %v461 = vsel %vm215, %v421, 0
        %v464 = vsel %vm215, %v422, 0
        %v467 = vsel %vm215, %v423, 0
        %v470 = vsel %vm215, %v424, 0
        %v473 = vsel %vm215, %v425, 0
        %v476 = vsel %vm215, %v426, 0
        %v479 = vsel %vm215, %v427, 0
        %v482 = vsel %vm215, %v428, 0
        %v485 = vsel %vm264, %v430, 0
        %487 = vmatprep.subr.mxu0 0.0
        %488 = vmatpush1.msra.mxu0 %v429
        %489 = vmatprep.subr.mxu0 0.0
        %490 = vmatpush1.msra.mxu0 %v485
        %491 = vmatprep.subr.mxu0 0.0
        %492 = vmatpush1.msra.mxu0 0.0
        %493 = vmatprep.subr.mxu0 0.0
        %494 = vmatpush1.msra.mxu0 0.0
        %495 = vmatprep.subr.mxu0 0.0
        %496 = vmatpush1.msra.mxu0 0.0
        %497 = vmatprep.subr.mxu0 0.0
        %498 = vmatpush1.msra.mxu0 0.0
        %499 = vmatprep.subr.mxu0 0.0
        %500 = vmatpush1.msra.mxu0 0.0
        %501 = vmatprep.subr.mxu0 0.0
        %502 = vmatpush1.msra.mxu0 0.0
        %503 = vmatprep.subr.mxu0 0.0
        %504 = vmatpush1.msra.mxu0 0.0
        %505 = vmatprep.subr.mxu0 0.0
        %506 = vmatpush1.msra.mxu0 0.0
        %507 = vmatprep.subr.mxu0 0.0
        %508 = vmatpush1.msra.mxu0 0.0
        %509 = vmatprep.subr.mxu0 0.0
        %510 = vmatpush1.msra.mxu0 0.0
        %511 = vmatprep.subr.mxu0 0.0
        %512 = vmatpush1.msra.mxu0 0.0
        %513 = vmatprep.subr.mxu0 0.0
        %514 = vmatpush1.msra.mxu0 0.0
        %515 = vmatprep.subr.mxu0 0.0
        %516 = vmatpush1.msra.mxu0 0.0
        %517 = vmatprep.subr.mxu0 0.0
        %518 = vmatpush1.msra.mxu0 0.0
        %519 = vmatprep.subr.mxu0 0.0
        %520 = vmatpush1.msra.mxu0 0.0
        %521 = vmatprep.subr.mxu0 0.0
        %522 = vmatpush1.msra.mxu0 0.0
        %523 = vmatprep.subr.mxu0 0.0
        %524 = vmatpush1.msra.mxu0 0.0
        %525 = vmatprep.subr.mxu0 0.0
        %526 = vmatpush1.msra.mxu0 0.0
        %527 = vmatprep.subr.mxu0 0.0
        %528 = vmatpush1.msra.mxu0 0.0
        %529 = vmatprep.subr.mxu0 0.0
        %530 = vmatpush1.msra.mxu0 0.0
        %531 = vmatprep.subr.mxu0 0.0
        %532 = vmatpush1.msra.mxu0 0.0
        %533 = vmatprep.subr.mxu0 0.0
        %534 = vmatpush1.msra.mxu0 0.0
        %535 = vmatprep.subr.mxu0 0.0
        %536 = vmatpush1.msra.mxu0 0.0
        %537 = vmatprep.subr.mxu0 0.0
        %538 = vmatpush1.msra.mxu0 0.0
        %539 = vmatprep.subr.mxu0 0.0
        %540 = vmatpush1.msra.mxu0 0.0
        %541 = vmatprep.subr.mxu0 0.0
        %542 = vmatpush1.msra.mxu0 0.0
        %543 = vmatprep.subr.mxu0 0.0
        %544 = vmatpush1.msra.mxu0 0.0
        %545 = vmatprep.subr.mxu0 0.0
        %546 = vmatpush1.msra.mxu0 0.0
        %547 = vmatprep.subr.mxu0 0.0
        %548 = vmatpush1.msra.mxu0 0.0
        %549 = vmatprep.subr.mxu0 0.0
        %550 = vmatpush1.msra.mxu0 0.0
        %551 = vmatprep.mubr.f32.mxu0 0.0
        %552 = vmatmul.mubr.f32.gmra.mrb[0].mxu0 %v437
        %v553 = vpop.f32.mrb[0].mxu0
        %v554 = vadd.f32 %v435, %v553
        %v555 = vpop.f32.mrb[0].mxu0
        %556 = vmatprep.mubr.f32.mxu0 0.0
        %557 = vmatmul.mubr.f32.gmra.mrb[0].mxu0 %v440
        %v558 = vpop.f32.mrb[0].mxu0
        %v559 = vadd.f32 %v435, %v558
        %v560 = vpop.f32.mrb[0].mxu0
        %561 = vmatprep.mubr.f32.mxu0 0.0
        %562 = vmatmul.mubr.f32.gmra.mrb[0].mxu0 %v443
        %v563 = vpop.f32.mrb[0].mxu0
        %v564 = vadd.f32 %v435, %v563
        %v565 = vpop.f32.mrb[0].mxu0
        %566 = vmatprep.mubr.f32.mxu0 0.0
        %567 = vmatmul.mubr.f32.gmra.mrb[0].mxu0 %v446
        %v568 = vpop.f32.mrb[0].mxu0
        %v569 = vadd.f32 %v435, %v568
        %v570 = vpop.f32.mrb[0].mxu0
        %571 = vmatprep.mubr.f32.mxu0 0.0
        %572 = vmatmul.mubr.f32.gmra.mrb[0].mxu0 %v449
        %v573 = vpop.f32.mrb[0].mxu0
        %v574 = vadd.f32 %v435, %v573
        %v575 = vpop.f32.mrb[0].mxu0
        %576 = vmatprep.mubr.f32.mxu0 0.0
        %577 = vmatmul.mubr.f32.gmra.mrb[0].mxu0 %v452
        %v578 = vpop.f32.mrb[0].mxu0
        %v579 = vadd.f32 %v435, %v578
        %v580 = vpop.f32.mrb[0].mxu0
        %581 = vmatprep.mubr.f32.mxu0 0.0
        %582 = vmatmul.mubr.f32.gmra.mrb[0].mxu0 %v455
        %v583 = vpop.f32.mrb[0].mxu0
        %v584 = vadd.f32 %v435, %v583
        %v585 = vpop.f32.mrb[0].mxu0
        %586 = vmatprep.mubr.f32.mxu0 0.0
        %587 = vmatmul.mubr.f32.gmra.mrb[0].mxu0 %v458
        %v588 = vpop.f32.mrb[0].mxu0
        %v589 = vadd.f32 %v435, %v588
        %v590 = vpop.f32.mrb[0].mxu0
        %591 = vmatprep.mubr.f32.mxu0 0.0
        %592 = vmatmul.mubr.f32.gmra.mrb[0].mxu0 %v461
        %v593 = vpop.f32.mrb[0].mxu0
        %v594 = vadd.f32 %v435, %v593
        %v595 = vpop.f32.mrb[0].mxu0
        %596 = vmatprep.mubr.f32.mxu0 0.0
        %597 = vmatmul.mubr.f32.gmra.mrb[0].mxu0 %v464
        %v598 = vpop.f32.mrb[0].mxu0
        %v599 = vadd.f32 %v435, %v598
        %v600 = vpop.f32.mrb[0].mxu0
        %601 = vmatprep.mubr.f32.mxu0 0.0
        %602 = vmatmul.mubr.f32.gmra.mrb[0].mxu0 %v467
        %v603 = vpop.f32.mrb[0].mxu0
        %v604 = vadd.f32 %v435, %v603
        %v605 = vpop.f32.mrb[0].mxu0
        %606 = vmatprep.mubr.f32.mxu0 0.0
        %607 = vmatmul.mubr.f32.gmra.mrb[0].mxu0 %v470
        %v608 = vpop.f32.mrb[0].mxu0
        %v609 = vadd.f32 %v435, %v608
        %v610 = vpop.f32.mrb[0].mxu0
        %611 = vmatprep.mubr.f32.mxu0 0.0
        %612 = vmatmul.mubr.f32.gmra.mrb[0].mxu0 %v473
        %v613 = vpop.f32.mrb[0].mxu0
        %v614 = vadd.f32 %v435, %v613
        %v615 = vpop.f32.mrb[0].mxu0
        %616 = vmatprep.mubr.f32.mxu0 0.0
        %617 = vmatmul.mubr.f32.gmra.mrb[0].mxu0 %v476
        %v618 = vpop.f32.mrb[0].mxu0
        %v619 = vadd.f32 %v435, %v618
        %v620 = vpop.f32.mrb[0].mxu0
        %621 = vmatprep.mubr.f32.mxu0 0.0
        %622 = vmatmul.mubr.f32.gmra.mrb[0].mxu0 %v479
        %v623 = vpop.f32.mrb[0].mxu0
        %v624 = vadd.f32 %v435, %v623
        %v625 = vpop.f32.mrb[0].mxu0
        %626 = vmatprep.mubr.f32.mxu0 0.0
        %627 = vmatmul.mubr.f32.gmra.mrb[0].mxu0 %v482
        %v628 = vpop.f32.mrb[0].mxu0
        %v629 = vadd.f32 %v435, %v628
        %v630 = vpop.f32.mrb[0].mxu0
        %631 = vdwg.mxu0
        %vm632 = vcmask 39936
        %633 = vst.msk [vmem:[%s172] sm:$0xff] %vm632, %v554
        %634 = vst.msk [vmem:[%s172 + $0x8] sm:$0xff] %vm632, %v559
        %635 = vst.msk [vmem:[%s172 + $0x10] sm:$0xff] %vm632, %v564
        %636 = vst.msk [vmem:[%s172 + $0x18] sm:$0xff] %vm632, %v569
        %637 = vst.msk [vmem:[%s172 + $0x20] sm:$0xff] %vm632, %v574
        %638 = vst.msk [vmem:[%s172 + $0x28] sm:$0xff] %vm632, %v579
        %639 = vst.msk [vmem:[%s172 + $0x30] sm:$0xff] %vm632, %v584
        %640 = vst.msk [vmem:[%s172 + $0x38] sm:$0xff] %vm632, %v589
        %641 = vst.msk [vmem:[%s172 + $0x40] sm:$0xff] %vm632, %v594
        %642 = vst.msk [vmem:[%s172 + $0x48] sm:$0xff] %vm632, %v599
        %643 = vst.msk [vmem:[%s172 + $0x50] sm:$0xff] %vm632, %v604
        %644 = vst.msk [vmem:[%s172 + $0x58] sm:$0xff] %vm632, %v609
        %645 = vst.msk [vmem:[%s172 + $0x60] sm:$0xff] %vm632, %v614
        %646 = vst.msk [vmem:[%s172 + $0x68] sm:$0xff] %vm632, %v619
        %647 = vst.msk [vmem:[%s172 + $0x70] sm:$0xff] %vm632, %v624
        %648 = vst.msk [vmem:[%s172 + $0x78] sm:$0xff] %vm632, %v629
        %s649 = sand.u32 %s90, 1
        %s650 = sand.u32 %s90, 1
        %s651 = smul.addr %s650, 128
        %s652 = scalar_lea.vmem [#allocation2], %s651
        // Predicated region
        $region33: #{tpu_custom_call.1} parent=31 // pred_check
          %p653 = pneg %p100
        $region34: #{tpu_custom_call.1} parent=31 // pred_check_branch
          %655 = sbr.rel (%p653) target = $region36
        $region35: #{tpu_custom_call.1} parent=31 // pred_region
          %s656 = smul.u32 16, %s14
          %s657 = ssub.s32 25, %s656
          %p658 = scmp.lt.s32.totalorder %s657, 16
          %s659 = scalar_select %p658, %s657, 16
          %s660 = smul.u32 128, %s659
          %p661 = scmp.ne.s32.totalorder 0, %s660
          %s662 = smul.addr %s656, 8
          %s663 = scalar_lea.vmem %s3, %s662
          // Predicated region
          $region37: #{tpu_custom_call.1} parent=35 // pred_check
            %p664 = pneg %p661
          $region38: #{tpu_custom_call.1} parent=35 // pred_check_branch
            %666 = sbr.rel (%p664) target = $region40
          $region39: #{tpu_custom_call.1} parent=35 // pred_region
            // Predicated region
            $region41: #{tpu_custom_call.1} parent=39 // pred_check
              _
            $region42: #{tpu_custom_call.1} parent=39 // pred_check_branch
              %668 = sbr.rel (0) target = $region44
            $region43: #{tpu_custom_call.1} parent=39 // pred_region
              // Predicated region
              $region63: #{tpu_custom_call.1} parent=43 // pred_check
                _
              $region64: #{tpu_custom_call.1} parent=43 // pred_check_branch
                %747 = sbr.rel (0) target = $region66
              $region65: #{tpu_custom_call.1} parent=43 // pred_region
                %s748 = sshrl.u32 %s659, 4
                // While loop
                $region67: #{tpu_custom_call.1} parent=65 // loop_pre_header
                  _
                $region68: #{tpu_custom_call.1} parent=65 // loop_header
                  %s750 = sphi 0, %s752
                  %p751 = scmp.ge.s32.totalorder %s750, %s748
                  %s755 = sphi 0, %s792
                  %s756 = sphi %s652, %s795
                  %s757 = sphi %s663, %s796
                $region69: #{tpu_custom_call.1} parent=65 // loop_header_branch
                  %754 = sbr.rel (%p751) target = $region73
                $region70: #{tpu_custom_call.1} parent=65 // loop_body
                  %v758 = vld [vmem:[%s756] sm:$0xff]
                  %759 = vst [vmem:[%s757] sm:$0xff] %v758
                  %v760 = vld [vmem:[%s756 + $0x8] sm:$0xff]
                  %761 = vst [vmem:[%s757 + $0x8] sm:$0xff] %v760
                  %v762 = vld [vmem:[%s756 + $0x10] sm:$0xff]
                  %763 = vst [vmem:[%s757 + $0x10] sm:$0xff] %v762
                  %v764 = vld [vmem:[%s756 + $0x18] sm:$0xff]
                  %765 = vst [vmem:[%s757 + $0x18] sm:$0xff] %v764
                  %v766 = vld [vmem:[%s756 + $0x20] sm:$0xff]
                  %767 = vst [vmem:[%s757 + $0x20] sm:$0xff] %v766
                  %v768 = vld [vmem:[%s756 + $0x28] sm:$0xff]
                  %769 = vst [vmem:[%s757 + $0x28] sm:$0xff] %v768
                  %v770 = vld [vmem:[%s756 + $0x30] sm:$0xff]
                  %771 = vst [vmem:[%s757 + $0x30] sm:$0xff] %v770
                  %v772 = vld [vmem:[%s756 + $0x38] sm:$0xff]
                  %773 = vst [vmem:[%s757 + $0x38] sm:$0xff] %v772
                  %v774 = vld [vmem:[%s756 + $0x40] sm:$0xff]
                  %775 = vst [vmem:[%s757 + $0x40] sm:$0xff] %v774
                  %v776 = vld [vmem:[%s756 + $0x48] sm:$0xff]
                  %777 = vst [vmem:[%s757 + $0x48] sm:$0xff] %v776
                  %v778 = vld [vmem:[%s756 + $0x50] sm:$0xff]
                  %779 = vst [vmem:[%s757 + $0x50] sm:$0xff] %v778
                  %v780 = vld [vmem:[%s756 + $0x58] sm:$0xff]
                  %781 = vst [vmem:[%s757 + $0x58] sm:$0xff] %v780
                  %v782 = vld [vmem:[%s756 + $0x60] sm:$0xff]
                  %783 = vst [vmem:[%s757 + $0x60] sm:$0xff] %v782
                  %v784 = vld [vmem:[%s756 + $0x68] sm:$0xff]
                  %785 = vst [vmem:[%s757 + $0x68] sm:$0xff] %v784
                  %v786 = vld [vmem:[%s756 + $0x70] sm:$0xff]
                  %787 = vst [vmem:[%s757 + $0x70] sm:$0xff] %v786
                  %v788 = vld [vmem:[%s756 + $0x78] sm:$0xff]
                  %789 = vst [vmem:[%s757 + $0x78] sm:$0xff] %v788
                  %s790 = sadd.s32 1, %s755
                  %p791 = scmp.ge.s32.totalorder %s790, %s748
                  %s792 = scalar_select %p791, 0, %s790
                  %s793 = smul.u32 %s792, 128
                  %s794 = smul.u32 %s792, 128
                  %s795 = scalar_lea.vmem %s652, %s793 [#allocation2]
                  %s796 = scalar_lea.vmem %s663, %s794
                $region71: #{tpu_custom_call.1} parent=65 // loop_footer
                  %s752 = sadd.s32 %s750, 1
                $region72: #{tpu_custom_call.1} parent=65 // loop_footer_branch
                  %749 = sbr.rel target = $region68
                $region73: #{tpu_custom_call.1} parent=65 // loop_exit
                  _
                %s797 = sshrl.u32 %s659, 4
                %s798 = sand.u32 %s659, 15
                %s799 = smul.u32 %s797, 16
                %s800 = smul.u32 8, %s799
                %s801 = scalar_lea.vmem %s652, %s800 [#allocation2]
                %s802 = smul.u32 8, %s799
                %s803 = scalar_lea.vmem %s663, %s802
                // While loop
                $region74: #{tpu_custom_call.1} parent=65 // loop_pre_header
                  _
                $region75: #{tpu_custom_call.1} parent=65 // loop_header
                  %s805 = sphi 0, %s807
                  %p806 = scmp.ge.s32.totalorder %s805, %s798
                  %s810 = sphi 0, %s817
                  %s811 = sphi %s801, %s820
                  %s812 = sphi %s803, %s821
                $region76: #{tpu_custom_call.1} parent=65 // loop_header_branch
                  %809 = sbr.rel (%p806) target = $region80
                $region77: #{tpu_custom_call.1} parent=65 // loop_body
                  %v813 = vld [vmem:[%s811] sm:$0xff]
                  %814 = vst [vmem:[%s812] sm:$0xff] %v813
                  %s815 = sadd.s32 1, %s810
                  %p816 = scmp.ge.s32.totalorder %s815, %s798
                  %s817 = scalar_select %p816, 0, %s815
                  %s818 = smul.u32 %s817, 8
                  %s819 = smul.u32 %s817, 8
                  %s820 = scalar_lea.vmem %s801, %s818 [#allocation2]
                  %s821 = scalar_lea.vmem %s803, %s819
                $region78: #{tpu_custom_call.1} parent=65 // loop_footer
                  %s807 = sadd.s32 %s805, 1
                $region79: #{tpu_custom_call.1} parent=65 // loop_footer_branch
                  %804 = sbr.rel target = $region75
                $region80: #{tpu_custom_call.1} parent=65 // loop_exit
                  _
              $region66: #{tpu_custom_call.1} parent=43 // pred_fallthru
                _
              // Predicated region
              $region81: #{tpu_custom_call.1} parent=43 // pred_check
                _
              $region82: #{tpu_custom_call.1} parent=43 // pred_check_branch
                %823 = sbr.rel target = $region84
              $region83: #{tpu_custom_call.1} parent=43 // pred_region
                _
              $region84: #{tpu_custom_call.1} parent=43 // pred_fallthru
                _
            $region44: #{tpu_custom_call.1} parent=39 // pred_fallthru
              _
            // Predicated region
            $region45: #{tpu_custom_call.1} parent=39 // pred_check
              _
            $region46: #{tpu_custom_call.1} parent=39 // pred_check_branch
              %670 = sbr.rel target = $region48
            $region47: #{tpu_custom_call.1} parent=39 // pred_region
              %s672 = sshrl.u32 %s659, 4
              // While loop
              $region49: #{tpu_custom_call.1} parent=47 // loop_pre_header
                _
              $region50: #{tpu_custom_call.1} parent=47 // loop_header
                %s674 = sphi 0, %s676
                %p675 = scmp.ge.s32.totalorder %s674, %s672
                %s679 = sphi 0, %s716
                %s680 = sphi %s652, %s719
                %s681 = sphi %s663, %s720
              $region51: #{tpu_custom_call.1} parent=47 // loop_header_branch
                %678 = sbr.rel (%p675) target = $region55
              $region52: #{tpu_custom_call.1} parent=47 // loop_body
                %v682 = vld [vmem:[%s680] sm:$0xff]
                %683 = vst [vmem:[%s681] sm:$0xff] %v682
                %v684 = vld [vmem:[%s680 + $0x8] sm:$0xff]
                %685 = vst [vmem:[%s681 + $0x8] sm:$0xff] %v684
                %v686 = vld [vmem:[%s680 + $0x10] sm:$0xff]
                %687 = vst [vmem:[%s681 + $0x10] sm:$0xff] %v686
                %v688 = vld [vmem:[%s680 + $0x18] sm:$0xff]
                %689 = vst [vmem:[%s681 + $0x18] sm:$0xff] %v688
                %v690 = vld [vmem:[%s680 + $0x20] sm:$0xff]
                %691 = vst [vmem:[%s681 + $0x20] sm:$0xff] %v690
                %v692 = vld [vmem:[%s680 + $0x28] sm:$0xff]
                %693 = vst [vmem:[%s681 + $0x28] sm:$0xff] %v692
                %v694 = vld [vmem:[%s680 + $0x30] sm:$0xff]
                %695 = vst [vmem:[%s681 + $0x30] sm:$0xff] %v694
                %v696 = vld [vmem:[%s680 + $0x38] sm:$0xff]
                %697 = vst [vmem:[%s681 + $0x38] sm:$0xff] %v696
                %v698 = vld [vmem:[%s680 + $0x40] sm:$0xff]
                %699 = vst [vmem:[%s681 + $0x40] sm:$0xff] %v698
                %v700 = vld [vmem:[%s680 + $0x48] sm:$0xff]
                %701 = vst [vmem:[%s681 + $0x48] sm:$0xff] %v700
                %v702 = vld [vmem:[%s680 + $0x50] sm:$0xff]
                %703 = vst [vmem:[%s681 + $0x50] sm:$0xff] %v702
                %v704 = vld [vmem:[%s680 + $0x58] sm:$0xff]
                %705 = vst [vmem:[%s681 + $0x58] sm:$0xff] %v704
                %v706 = vld [vmem:[%s680 + $0x60] sm:$0xff]
                %707 = vst [vmem:[%s681 + $0x60] sm:$0xff] %v706
                %v708 = vld [vmem:[%s680 + $0x68] sm:$0xff]
                %709 = vst [vmem:[%s681 + $0x68] sm:$0xff] %v708
                %v710 = vld [vmem:[%s680 + $0x70] sm:$0xff]
                %711 = vst [vmem:[%s681 + $0x70] sm:$0xff] %v710
                %v712 = vld [vmem:[%s680 + $0x78] sm:$0xff]
                %713 = vst [vmem:[%s681 + $0x78] sm:$0xff] %v712
                %s714 = sadd.s32 1, %s679
                %p715 = scmp.ge.s32.totalorder %s714, %s672
                %s716 = scalar_select %p715, 0, %s714
                %s717 = smul.u32 %s716, 128
                %s718 = smul.u32 %s716, 128
                %s719 = scalar_lea.vmem %s652, %s717 [#allocation2]
                %s720 = scalar_lea.vmem %s663, %s718
              $region53: #{tpu_custom_call.1} parent=47 // loop_footer
                %s676 = sadd.s32 %s674, 1
              $region54: #{tpu_custom_call.1} parent=47 // loop_footer_branch
                %673 = sbr.rel target = $region50
              $region55: #{tpu_custom_call.1} parent=47 // loop_exit
                _
              %s721 = sshrl.u32 %s659, 4
              %s722 = sand.u32 %s659, 15
              %s723 = smul.u32 %s721, 16
              %s724 = smul.u32 8, %s723
              %s725 = scalar_lea.vmem %s652, %s724 [#allocation2]
              %s726 = smul.u32 8, %s723
              %s727 = scalar_lea.vmem %s663, %s726
              // While loop
              $region56: #{tpu_custom_call.1} parent=47 // loop_pre_header
                _
              $region57: #{tpu_custom_call.1} parent=47 // loop_header
                %s729 = sphi 0, %s731
                %p730 = scmp.ge.s32.totalorder %s729, %s722
                %s734 = sphi 0, %s741
                %s735 = sphi %s725, %s744
                %s736 = sphi %s727, %s745
              $region58: #{tpu_custom_call.1} parent=47 // loop_header_branch
                %733 = sbr.rel (%p730) target = $region62
              $region59: #{tpu_custom_call.1} parent=47 // loop_body
                %v737 = vld [vmem:[%s735] sm:$0xff]
                %738 = vst [vmem:[%s736] sm:$0xff] %v737
                %s739 = sadd.s32 1, %s734
                %p740 = scmp.ge.s32.totalorder %s739, %s722
                %s741 = scalar_select %p740, 0, %s739
                %s742 = smul.u32 %s741, 8
                %s743 = smul.u32 %s741, 8
                %s744 = scalar_lea.vmem %s725, %s742 [#allocation2]
                %s745 = scalar_lea.vmem %s727, %s743
              $region60: #{tpu_custom_call.1} parent=47 // loop_footer
                %s731 = sadd.s32 %s729, 1
              $region61: #{tpu_custom_call.1} parent=47 // loop_footer_branch
                %728 = sbr.rel target = $region57
              $region62: #{tpu_custom_call.1} parent=47 // loop_exit
                _
            $region48: #{tpu_custom_call.1} parent=39 // pred_fallthru
              _
          $region40: #{tpu_custom_call.1} parent=35 // pred_fallthru
            _
          %824 = vnop
        $region36: #{tpu_custom_call.1} parent=31 // pred_fallthru
          _
      $region32: #{tpu_custom_call.1} parent=5 // pred_fallthru
        _
      %p825 = scmp.le.s32.totalorder 2, %s9
      // Predicated region
      $region85: #{tpu_custom_call.1} parent=5 // pred_check
        %p826 = pneg %p825
      $region86: #{tpu_custom_call.1} parent=5 // pred_check_branch
        %828 = sbr.rel (%p826) target = $region88
      $region87: #{tpu_custom_call.1} parent=5 // pred_region
        %s829 = ssub.s32 %s9, 2
        // Predicated region
        $region89: #{tpu_custom_call.1} parent=87 // pred_check
          %p830 = pneg %p106
        $region90: #{tpu_custom_call.1} parent=87 // pred_check_branch
          %832 = sbr.rel (%p830) target = $region92
        $region91: #{tpu_custom_call.1} parent=87 // pred_region
          %s833 = sand.u32 %s91, 1
          %s834 = sand.u32 %s91, 1
          %s835 = smul.addr %s834, 128
          %s836 = scalar_lea.vmem [#allocation2], %s835
        $region92: #{tpu_custom_call.1} parent=87 // pred_fallthru
          _
      $region88: #{tpu_custom_call.1} parent=5 // pred_fallthru
        _
    $region6: #{tpu_custom_call.1} parent=1 // loop_footer
      %s13 = sadd.s32 1, %s9
    $region7: #{tpu_custom_call.1} parent=1 // loop_footer_branch
      %8 = sbr.rel target = $region3
    $region8: #{tpu_custom_call.1} parent=1 // loop_exit
      _

</llo_original>
